<compile_context>
chip_gen: v6e
topology: v6e:2x2x1
jax: 0.10.0
libtpu: 0.0.40
codegen_flags: <defaults>
</compile_context>

<pallas_src>
import functools

import jax
import jax.numpy as jnp
from jax.experimental import pallas as pl
from jax.experimental.pallas import tpu as pltpu  # noqa: F401  (kept for TPU-specific tuning hooks)

HIDDEN = 128
LANES = 128
LEAKY_SLOPE = 0.01
BN_EPS = 1e-5
ACT_PAD = 8  # padded width of concat([action, action_other]) (2*action_size <= 8)

# Row layout of the packed weight/param slab (all section offsets are multiples of 8
# so in-kernel Ref slices stay (8,128)-tile aligned):
_W1_OFF = 0                      # rows [  0, 128): fcs1 weight, input dim zero-padded to 128
_W2S_OFF = _W1_OFF + LANES       # rows [128, 256): fc2 weight, xs part (128 x 128)
_W2A_OFF = _W2S_OFF + HIDDEN     # rows [256, 264): fc2 weight, [action; action_other], padded to 8
_PAR_OFF = _W2A_OFF + ACT_PAD    # rows [264, 272): parameter rows (gamma/beta/b1/b2/w3/b3)
_SLAB_ROWS = _PAR_OFF + 8        # 272 rows total (272 * 128 * 4B = 136 KiB)
# parameter row indices inside the (8, 128) parameter tile
_R_GAMMA, _R_BETA, _R_B1, _R_B2, _R_W3, _R_B3 = 0, 1, 2, 3, 4, 5


def _leaky_relu(x):
    return jnp.where(x > 0, x, LEAKY_SLOPE * x)


def critic_kernel(state_ref, acts_ref, w_ref, out_ref, *, dot_dtype=jnp.float32):
    f32 = jnp.float32

    def mxu(a, b):
        return jnp.dot(a.astype(dot_dtype), b.astype(dot_dtype),
                       preferred_element_type=f32)

    x = state_ref[...]                              # (B, 128); lanes >= state_size are zero
    par = w_ref[_PAR_OFF:_PAR_OFF + 8, :]           # (8, 128) parameter tile

    # ---- BatchNorm1d over the batch axis (training-mode stats, biased variance) ----
    mean = jnp.mean(x, axis=0, keepdims=True)
    var = jnp.mean((x - mean) ** 2, axis=0, keepdims=True)
    xn = (x - mean) * jax.lax.rsqrt(var + BN_EPS)
    # padded lanes: gamma = beta = 0  ->  xn stays 0 there
    xn = xn * par[_R_GAMMA:_R_GAMMA + 1, :] + par[_R_BETA:_R_BETA + 1, :]

    # ---- fcs1 + leaky_relu ----
    w1 = w_ref[_W1_OFF:_W1_OFF + LANES, :]          # (128, 128), zero rows past state_size
    h1 = _leaky_relu(mxu(xn, w1) + par[_R_B1:_R_B1 + 1, :])          # (B, 128)

    # ---- concat + fc2 + leaky_relu  (concat expressed as a split matmul) ----
    w2s = w_ref[_W2S_OFF:_W2S_OFF + HIDDEN, :]      # (128, 128)
    w2a = w_ref[_W2A_OFF:_W2A_OFF + ACT_PAD, :]     # (8, 128), zero rows past 2*action_size
    h2 = mxu(h1, w2s) + mxu(acts_ref[...], w2a) + par[_R_B2:_R_B2 + 1, :]
    h2 = _leaky_relu(h2)                                             # (B, 128)

    # ---- fc3 on the VPU/XLU: elementwise multiply + lane reduction (no 1-col MXU op) ----
    r = jnp.sum(h2 * par[_R_W3:_R_W3 + 1, :], axis=-1, keepdims=True)  # (B, 1)
    # lane-dense output: every lane carries result + b3 (b3 row is pre-broadcast in the slab)
    out_ref[...] = r + par[_R_B3:_R_B3 + 1, :]                         # (B, 128)


def pack_params(params, state_size, action_size):
    """One-time packing of all weights / biases / BN params into a single f32 slab."""
    slab = jnp.zeros((_SLAB_ROWS, LANES), jnp.float32)
    slab = slab.at[_W1_OFF:_W1_OFF + state_size, :].set(params["w1"])
    slab = slab.at[_W2S_OFF:_W2S_OFF + HIDDEN, :].set(params["w2s"])
    w2ao = jnp.concatenate([params["w2a"], params["w2o"]], axis=0)     # (2A, 128)
    slab = slab.at[_W2A_OFF:_W2A_OFF + 2 * action_size, :].set(w2ao)
    p = _PAR_OFF
    slab = slab.at[p + _R_GAMMA, :state_size].set(params["gamma"][0])
    slab = slab.at[p + _R_BETA, :state_size].set(params["beta"][0])
    slab = slab.at[p + _R_B1, :].set(params["b1"][0])
    slab = slab.at[p + _R_B2, :].set(params["b2"][0])
    slab = slab.at[p + _R_W3, :].set(params["w3"][:, 0])
    slab = slab.at[p + _R_B3, :].set(jnp.broadcast_to(params["b3"][0, 0], (LANES,)))
    return slab


def critic_forward(state, action, action_other, w_slab, *, dot_dtype=jnp.float32):
    """Forward pass. `w_slab` comes from pack_params(); dot_dtype=bf16 for v6e/v7x big batches."""
    B, S = state.shape
    a1 = action.shape[1]
    a2 = a1 + action_other.shape[1]
    assert a2 <= ACT_PAD and S <= LANES

    # Layout plumbing (outside the kernel): lane-pad state to 128, concat + pad actions to 8.
    state_pad = jnp.zeros((B, LANES), jnp.float32).at[:, :S].set(state.astype(jnp.float32))
    acts_pad = jnp.zeros((B, ACT_PAD), jnp.float32)
    acts_pad = acts_pad.at[:, :a1].set(action.astype(jnp.float32))
    acts_pad = acts_pad.at[:, a1:a2].set(action_other.astype(jnp.float32))

    kernel = functools.partial(critic_kernel, dot_dtype=dot_dtype)
    out = pl.pallas_call(
        kernel,
        out_shape=jax.ShapeDtypeStruct((B, LANES), jnp.float32),
        grid=(),  # single program: whole problem fits comfortably in VMEM; nothing to pipeline
        in_specs=[
            pl.BlockSpec((B, LANES), lambda: (0, 0)),
            pl.BlockSpec((B, ACT_PAD), lambda: (0, 0)),
            pl.BlockSpec((_SLAB_ROWS, LANES), lambda: (0, 0)),
        ],
        out_specs=pl.BlockSpec((B, LANES), lambda: (0, 0)),
    )(state_pad, acts_pad, w_slab)
    return out[:, :1]  # lane-dense slab -> (B, 1) result column


def init_params(key, state_size, action_size):
    """Deterministic parameter init mirroring the PyTorch module's shapes/ranges."""
    ks = jax.random.split(key, 6)
    lim1 = 1.0 / jnp.sqrt(jnp.float32(HIDDEN))   # hidden_init uses weight.size()[0] == out_features
    lim2 = 1.0 / jnp.sqrt(jnp.float32(HIDDEN))
    fc2_in = HIDDEN + 2 * action_size

    w1 = jax.random.uniform(ks[0], (state_size, HIDDEN), jnp.float32, -lim1, lim1)
    b1 = jax.random.uniform(ks[1], (1, HIDDEN), jnp.float32, -lim1, lim1)
    w2 = jax.random.uniform(ks[2], (fc2_in, HIDDEN), jnp.float32, -lim2, lim2)
    b2 = jax.random.uniform(ks[3], (1, HIDDEN), jnp.float32, -lim2, lim2)
    w3 = jax.random.uniform(ks[4], (HIDDEN, 1), jnp.float32, -0.003, 0.003)
    b3 = jax.random.uniform(ks[5], (1, 1), jnp.float32, -0.003, 0.003)

    return {
        "gamma": jnp.ones((1, state_size), jnp.float32),
        "beta": jnp.zeros((1, state_size), jnp.float32),
        "w1": w1, "b1": b1,
        # fc2 weight split along its input dim: [xs | action | action_other]
        "w2s": w2[:HIDDEN], "w2a": w2[HIDDEN:HIDDEN + action_size],
        "w2o": w2[HIDDEN + action_size:], "b2": b2,
        "w3": w3, "b3": b3,
    }


def critic_reference(state, action, action_other, p):
    x = state.astype(jnp.float32)
    mean = jnp.mean(x, axis=0, keepdims=True)
    var = jnp.mean((x - mean) ** 2, axis=0, keepdims=True)
    xn = (x - mean) / jnp.sqrt(var + BN_EPS) * p["gamma"] + p["beta"]
    h1 = _leaky_relu(xn @ p["w1"] + p["b1"])
    xcat = jnp.concatenate([h1, action, action_other], axis=1)
    w2 = jnp.concatenate([p["w2s"], p["w2a"], p["w2o"]], axis=0)
    h2 = _leaky_relu(xcat @ w2 + p["b2"])
    return h2 @ p["w3"] + p["b3"]


if __name__ == "__main__":
    # Tennis-like sizes, kept small: batch=8, state_size=24, action_size=2
    B, STATE_SIZE, ACTION_SIZE = 8, 24, 2

    key = jax.random.PRNGKey(0)
    k_state, k_act, k_acto, k_params = jax.random.split(key, 4)

    state = jax.random.normal(k_state, (B, STATE_SIZE), jnp.float32)
    action = jax.random.uniform(k_act, (B, ACTION_SIZE), jnp.float32, -1.0, 1.0)
    action_other = jax.random.uniform(k_acto, (B, ACTION_SIZE), jnp.float32, -1.0, 1.0)

    params = init_params(k_params, STATE_SIZE, ACTION_SIZE)
    w_slab = pack_params(params, STATE_SIZE, ACTION_SIZE)   # one-time weight packing

    out = critic_forward(state, action, action_other, w_slab)
    out = jax.block_until_ready(out)

    ref = critic_reference(state, action, action_other, params)
    assert out.shape == (B, 1), out.shape
    assert jnp.allclose(out, ref, atol=1e-4, rtol=1e-4), (out, ref)

    print("KERNEL_OK")
</pallas_src>

<mosaic_0001>
module attributes {stable_mosaic.version = 11 : i64} {
  func.func @critic_kernel(%arg0: memref<8x128xf32, #tpu.memory_space<vmem>>, %arg1: memref<8x8xf32, #tpu.memory_space<vmem>>, %arg2: memref<272x128xf32, #tpu.memory_space<vmem>>, %arg3: memref<8x128xf32, #tpu.memory_space<vmem>>) attributes {dimension_semantics = [], scalar_prefetch = 0 : i64, scratch_operands = 0 : i64, tpu.core_type = #tpu.core_type<tc>} {
    %c0 = arith.constant 0 : index
    %c0_0 = arith.constant 0 : index
    %0 = vector.load %arg0[%c0, %c0_0] : memref<8x128xf32, #tpu.memory_space<vmem>>, vector<8x128xf32>
    %c264 = arith.constant 264 : index
    %c0_1 = arith.constant 0 : index
    %1 = vector.load %arg2[%c264, %c0_1] : memref<272x128xf32, #tpu.memory_space<vmem>>, vector<8x128xf32>
    %cst = arith.constant dense<0.000000e+00> : vector<128xf32>
    %2 = vector.multi_reduction <add>, %0, %cst [0] : vector<8x128xf32> to vector<128xf32>
    %3 = vector.shape_cast %2 : vector<128xf32> to vector<1x128xf32>
    %cst_2 = arith.constant 8.000000e+00 : f32
    %4 = vector.broadcast %cst_2 : f32 to vector<1x128xf32>
    %5 = arith.divf %3, %4 : vector<1x128xf32>
    %6 = vector.broadcast %5 : vector<1x128xf32> to vector<8x128xf32>
    %7 = arith.subf %0, %6 : vector<8x128xf32>
    %8 = arith.mulf %7, %7 : vector<8x128xf32>
    %cst_3 = arith.constant dense<0.000000e+00> : vector<128xf32>
    %9 = vector.multi_reduction <add>, %8, %cst_3 [0] : vector<8x128xf32> to vector<128xf32>
    %10 = vector.shape_cast %9 : vector<128xf32> to vector<1x128xf32>
    %cst_4 = arith.constant 8.000000e+00 : f32
    %11 = vector.broadcast %cst_4 : f32 to vector<1x128xf32>
    %12 = arith.divf %10, %11 : vector<1x128xf32>
    %13 = vector.broadcast %5 : vector<1x128xf32> to vector<8x128xf32>
    %14 = arith.subf %0, %13 : vector<8x128xf32>
    %cst_5 = arith.constant 9.99999974E-6 : f32
    %15 = vector.broadcast %cst_5 : f32 to vector<1x128xf32>
    %16 = arith.addf %12, %15 : vector<1x128xf32>
    %17 = math.rsqrt %16 : vector<1x128xf32>
    %18 = vector.broadcast %17 : vector<1x128xf32> to vector<8x128xf32>
    %19 = arith.mulf %14, %18 : vector<8x128xf32>
    %20 = vector.extract_strided_slice %1 {offsets = [0, 0], sizes = [1, 128], strides = [1, 1]} : vector<8x128xf32> to vector<1x128xf32>
    %21 = vector.broadcast %20 : vector<1x128xf32> to vector<8x128xf32>
    %22 = arith.mulf %19, %21 : vector<8x128xf32>
    %23 = vector.extract_strided_slice %1 {offsets = [1, 0], sizes = [1, 128], strides = [1, 1]} : vector<8x128xf32> to vector<1x128xf32>
    %24 = vector.broadcast %23 : vector<1x128xf32> to vector<8x128xf32>
    %25 = arith.addf %22, %24 : vector<8x128xf32>
    %c0_6 = arith.constant 0 : index
    %c0_7 = arith.constant 0 : index
    %26 = vector.load %arg2[%c0_6, %c0_7] : memref<272x128xf32, #tpu.memory_space<vmem>>, vector<128x128xf32>
    %cst_8 = arith.constant dense<0.000000e+00> : vector<8x128xf32>
    %27 = tpu.matmul %25, %26, %cst_8 {dimension_numbers = #tpu.dot_dimension_numbers<[1], [0], [0], [1], [0, 0, 1, 1], [], []>} : vector<8x128xf32>, vector<128x128xf32>, vector<8x128xf32> -> vector<8x128xf32>
    %28 = vector.extract_strided_slice %1 {offsets = [2, 0], sizes = [1, 128], strides = [1, 1]} : vector<8x128xf32> to vector<1x128xf32>
    %29 = vector.broadcast %28 : vector<1x128xf32> to vector<8x128xf32>
    %30 = arith.addf %27, %29 : vector<8x128xf32>
    %cst_9 = arith.constant 0.000000e+00 : f32
    %31 = vector.broadcast %cst_9 : f32 to vector<8x128xf32>
    %32 = arith.cmpf ogt, %30, %31 : vector<8x128xf32>
    %cst_10 = arith.constant 0.00999999977 : f32
    %33 = vector.broadcast %cst_10 : f32 to vector<8x128xf32>
    %34 = arith.mulf %33, %30 : vector<8x128xf32>
    %35 = arith.select %32, %30, %34 : vector<8x128xi1>, vector<8x128xf32>
    %c128 = arith.constant 128 : index
    %c0_11 = arith.constant 0 : index
    %36 = vector.load %arg2[%c128, %c0_11] : memref<272x128xf32, #tpu.memory_space<vmem>>, vector<128x128xf32>
    %c256 = arith.constant 256 : index
    %c0_12 = arith.constant 0 : index
    %37 = vector.load %arg2[%c256, %c0_12] : memref<272x128xf32, #tpu.memory_space<vmem>>, vector<8x128xf32>
    %cst_13 = arith.constant dense<0.000000e+00> : vector<8x128xf32>
    %38 = tpu.matmul %35, %36, %cst_13 {dimension_numbers = #tpu.dot_dimension_numbers<[1], [0], [0], [1], [0, 0, 1, 1], [], []>} : vector<8x128xf32>, vector<128x128xf32>, vector<8x128xf32> -> vector<8x128xf32>
    %c0_14 = arith.constant 0 : index
    %c0_15 = arith.constant 0 : index
    %39 = vector.load %arg1[%c0_14, %c0_15] : memref<8x8xf32, #tpu.memory_space<vmem>>, vector<8x8xf32>
    %cst_16 = arith.constant dense<0.000000e+00> : vector<8x128xf32>
    %40 = tpu.matmul %39, %37, %cst_16 {dimension_numbers = #tpu.dot_dimension_numbers<[1], [0], [0], [1], [0, 0, 1, 1], [], []>} : vector<8x8xf32>, vector<8x128xf32>, vector<8x128xf32> -> vector<8x128xf32>
    %41 = arith.addf %38, %40 : vector<8x128xf32>
    %42 = vector.extract_strided_slice %1 {offsets = [3, 0], sizes = [1, 128], strides = [1, 1]} : vector<8x128xf32> to vector<1x128xf32>
    %43 = vector.broadcast %42 : vector<1x128xf32> to vector<8x128xf32>
    %44 = arith.addf %41, %43 : vector<8x128xf32>
    %cst_17 = arith.constant 0.000000e+00 : f32
    %45 = vector.broadcast %cst_17 : f32 to vector<8x128xf32>
    %46 = arith.cmpf ogt, %44, %45 : vector<8x128xf32>
    %cst_18 = arith.constant 0.00999999977 : f32
    %47 = vector.broadcast %cst_18 : f32 to vector<8x128xf32>
    %48 = arith.mulf %47, %44 : vector<8x128xf32>
    %49 = arith.select %46, %44, %48 : vector<8x128xi1>, vector<8x128xf32>
    %50 = vector.extract_strided_slice %1 {offsets = [4, 0], sizes = [1, 128], strides = [1, 1]} : vector<8x128xf32> to vector<1x128xf32>
    %51 = vector.broadcast %50 : vector<1x128xf32> to vector<8x128xf32>
    %52 = arith.mulf %49, %51 : vector<8x128xf32>
    %cst_19 = arith.constant dense<0.000000e+00> : vector<8xf32>
    %53 = vector.multi_reduction <add>, %52, %cst_19 [1] : vector<8x128xf32> to vector<8xf32>
    %54 = vector.shape_cast %53 : vector<8xf32> to vector<8x1xf32>
    %55 = vector.extract_strided_slice %1 {offsets = [5, 0], sizes = [1, 128], strides = [1, 1]} : vector<8x128xf32> to vector<1x128xf32>
    %56 = vector.broadcast %54 : vector<8x1xf32> to vector<8x128xf32>
    %57 = vector.broadcast %55 : vector<1x128xf32> to vector<8x128xf32>
    %58 = arith.addf %56, %57 : vector<8x128xf32>
    %c0_20 = arith.constant 0 : index
    %c0_21 = arith.constant 0 : index
    %59 = vector.load %arg3[%c0_20, %c0_21] : memref<8x128xf32, #tpu.memory_space<vmem>>, vector<8x128xf32>
    tpu.vector_store %arg3[%c0_20, %c0_21], %58 {strides = array<i32>} : memref<8x128xf32, #tpu.memory_space<vmem>>, vector<8x128xf32>,
    return
  }
}

</mosaic_0001>

<llo_original>
// kernel: tpu_custom_call.1
$region0: #{tpu_custom_call.1}
  #allocation0 [shape = 'u32[]', space=smem, size = 0x4, offset = 0x4, fixed_abs, tag = 'smem constant byte address 0x4 - core index']
  #allocation1 [shape = 'u32[144,128]{1,0:T(1,128)}', space=vmem, size = 0x12000, scoped, tag = 'internal scratch']
  %s0 = inlined_call_operand.hbm [shape: f32[8,128], index: 0, kind: input, shape index: {}]
  %s1 = inlined_call_operand.hbm [shape: f32[8,8], index: 1, kind: input, shape index: {}]
  %s2 = inlined_call_operand.hbm [shape: f32[272,128], index: 2, kind: input, shape index: {}]
  %s3 = inlined_call_operand.hbm [shape: f32[8,128], index: 3, kind: output, shape index: {}]
  %s4 = sld [smem:[#allocation0]]
  $region34: #{tpu_custom_call.1} parent=0
    _
  %s6 = ssub.s32 1, %s4
  %s7 = scalar_select 0, %s6, %s4
  $region1: #{tpu_custom_call.1} parent=0
    #allocation2 [shape = 'u8[4096]{0}', space=vmem, size = 0x1000, scoped, tag = 'input window, operand 0, single buffered']
    #allocation3 [shape = 's32[1]{0}', space=sflag, size = 0x4, scoped, tag = 'scoped memory for tpu_custom_call.1']
    #allocation4 [shape = 's32[1]{0}', space=sflag, size = 0x4, scoped, tag = 'scoped memory for tpu_custom_call.1']
    #allocation5 [shape = 'u8[4096]{0}', space=vmem, size = 0x1000, scoped, tag = 'input window, operand 1, single buffered']
    #allocation6 [shape = 's32[1]{0}', space=sflag, size = 0x4, scoped, tag = 'scoped memory for tpu_custom_call.1']
    #allocation7 [shape = 'u8[139264]{0}', space=vmem, size = 0x22000, scoped, tag = 'input window, operand 2, single buffered']
    #allocation8 [shape = 'u8[4096]{0}', space=vmem, size = 0x1000, scoped, tag = 'output window, operand 0, single buffered']
    %8 = vsyncpa [#allocation3], 0
    %9 = vsyncpa [#allocation6], 0
    %10 = vsyncpa [#allocation4], 0
    // Predicated region
    $region2: #{tpu_custom_call.1} parent=1 // pred_check
      _
    $region3: #{tpu_custom_call.1} parent=1 // pred_check_branch
      %12 = sbr.rel (0) target = $region5
    $region4: #{tpu_custom_call.1} parent=1 // pred_region
      %s14 = ssub.s32 128, 128
      %15 = vsyncadd [#allocation3], %s14
      %s17 = sshll.u32 [#allocation2], 4
      %s18 = int_to_ptr.vmem [resolvable:$true] %s17
      %20 = dma.hbm_to_vmem [thread:$0]  %s0, 128, %s18, [#allocation3]
    $region5: #{tpu_custom_call.1} parent=1 // pred_fallthru
      _
    // Predicated region
    $region6: #{tpu_custom_call.1} parent=1 // pred_check
      _
    $region7: #{tpu_custom_call.1} parent=1 // pred_check_branch
      %22 = sbr.rel (0) target = $region9
    $region8: #{tpu_custom_call.1} parent=1 // pred_region
      %s24 = ssub.s32 128, 128
      %25 = vsyncadd [#allocation6], %s24
      %s27 = sshll.u32 [#allocation5], 4
      %s28 = int_to_ptr.vmem [resolvable:$true] %s27
      %30 = dma.hbm_to_vmem [thread:$0]  %s1, 128, %s28, [#allocation6]
    $region9: #{tpu_custom_call.1} parent=1 // pred_fallthru
      _
    // Predicated region
    $region10: #{tpu_custom_call.1} parent=1 // pred_check
      _
    $region11: #{tpu_custom_call.1} parent=1 // pred_check_branch
      %32 = sbr.rel (0) target = $region13
    $region12: #{tpu_custom_call.1} parent=1 // pred_region
      %s34 = ssub.s32 4352, 4352
      %35 = vsyncadd [#allocation6], %s34
      %s36 = sshll.u32 [#allocation7], 4
      %s37 = int_to_ptr.vmem [resolvable:$true] %s36
      %42 = dma.hbm_to_vmem [thread:$0]  %s2, 4352, %s37, [#allocation6], 128, 128, 8
    $region13: #{tpu_custom_call.1} parent=1 // pred_fallthru
      _
    // Predicated region
    $region14: #{tpu_custom_call.1} parent=1 // pred_check
      _
    $region15: #{tpu_custom_call.1} parent=1 // pred_check_branch
      %44 = sbr.rel (0) target = $region17
    $region16: #{tpu_custom_call.1} parent=1 // pred_region
      %45 = dma.done [#allocation3], 128
    $region17: #{tpu_custom_call.1} parent=1 // pred_fallthru
      _
    // Predicated region
    $region18: #{tpu_custom_call.1} parent=1 // pred_check
      _
    $region19: #{tpu_custom_call.1} parent=1 // pred_check_branch
      %47 = sbr.rel (0) target = $region21
    $region20: #{tpu_custom_call.1} parent=1 // pred_region
      %48 = dma.done [#allocation6], 128
    $region21: #{tpu_custom_call.1} parent=1 // pred_fallthru
      _
    // Predicated region
    $region22: #{tpu_custom_call.1} parent=1 // pred_check
      _
    $region23: #{tpu_custom_call.1} parent=1 // pred_check_branch
      %50 = sbr.rel (0) target = $region25
    $region24: #{tpu_custom_call.1} parent=1 // pred_region
      %51 = dma.done [#allocation6], 4352
    $region25: #{tpu_custom_call.1} parent=1 // pred_fallthru
      _
    %v52 = vld [vmem:[#allocation2] sm:$0xff]
    %v53 = vld [vmem:[#allocation7 + $0x108] sm:$0xff]
    %v54 = vrot.slane %v52, 4
    %v55 = vadd.f32 %v52, %v54
    %v56 = vrot.slane %v55, 2
    %v57 = vadd.f32 %v55, %v56
    %v58 = vrot.slane %v57, 1
    %v59 = vadd.f32 %v57, %v58
    %v60 = vrcp.pop 8.0
    %v61 = vmul.f32 %v59, %v60
    %v62 = vsub.f32 %v52, %v61
    %v63 = vmul.f32 %v62, %v62
    %v64 = vrot.slane %v63, 4
    %v65 = vadd.f32 %v63, %v64
    %v66 = vrot.slane %v65, 2
    %v67 = vadd.f32 %v65, %v66
    %v68 = vrot.slane %v67, 1
    %v69 = vadd.f32 %v67, %v68
    %v70 = vmul.f32 %v69, %v60
    %v71 = vadd.f32 %v70, 1e-05
    %v72 = vrsqrt.pop %v71
    %v73 = vmul.f32 %v62, %v72
    %v74 = vlaneseq
    %v75 = vshrl.u32 %v74, 7
    %v76 = vsub.s32 0, %v75
    %v77 = vrot.slane %v53, %v76
    %v78 = vmul.f32 %v73, %v77
    %v79 = vlaneseq
    %v80 = vshrl.u32 %v79, 7
    %v81 = vsub.s32 1, %v80
    %v82 = vrot.slane %v53, %v81
    %v83 = vadd.f32 %v78, %v82
    %v84 = vld [vmem:[#allocation7] sm:$0xff]
    %v85 = vld [vmem:[#allocation7 + $0x8] sm:$0xff]
    %v86 = vld [vmem:[#allocation7 + $0x10] sm:$0xff]
    %v87 = vld [vmem:[#allocation7 + $0x18] sm:$0xff]
    %v88 = vld [vmem:[#allocation7 + $0x20] sm:$0xff]
    %v89 = vld [vmem:[#allocation7 + $0x28] sm:$0xff]
    %v90 = vld [vmem:[#allocation7 + $0x30] sm:$0xff]
    %v91 = vld [vmem:[#allocation7 + $0x38] sm:$0xff]
    %v92 = vld [vmem:[#allocation7 + $0x40] sm:$0xff]
    %v93 = vld [vmem:[#allocation7 + $0x48] sm:$0xff]
    %v94 = vld [vmem:[#allocation7 + $0x50] sm:$0xff]
    %v95 = vld [vmem:[#allocation7 + $0x58] sm:$0xff]
    %v96 = vld [vmem:[#allocation7 + $0x60] sm:$0xff]
    %v97 = vld [vmem:[#allocation7 + $0x68] sm:$0xff]
    %v98 = vld [vmem:[#allocation7 + $0x70] sm:$0xff]
    %v99 = vld [vmem:[#allocation7 + $0x78] sm:$0xff]
    %v100 = vlaneseq
    %v101 = vshrl.u32 %v100, 7
    %v102 = vsub.s32 2, %v101
    %v103 = vrot.slane %v53, %v102
    %104 = vmatprep.subr.mxu0 0.0
    %105 = vmatpush1.msra.mxu0 %v99
    %106 = vmatprep.subr.mxu0 0.0
    %107 = vmatpush1.msra.mxu0 %v98
    %108 = vmatprep.subr.mxu0 0.0
    %109 = vmatpush1.msra.mxu0 %v97
    %110 = vmatprep.subr.mxu0 0.0
    %111 = vmatpush1.msra.mxu0 %v96
    %112 = vmatprep.subr.mxu0 0.0
    %113 = vmatpush1.msra.mxu0 %v95
    %114 = vmatprep.subr.mxu0 0.0
    %115 = vmatpush1.msra.mxu0 %v94
    %116 = vmatprep.subr.mxu0 0.0
    %117 = vmatpush1.msra.mxu0 %v93
    %118 = vmatprep.subr.mxu0 0.0
    %119 = vmatpush1.msra.mxu0 %v92
    %120 = vmatprep.subr.mxu0 0.0
    %121 = vmatpush1.msra.mxu0 %v91
    %122 = vmatprep.subr.mxu0 0.0
    %123 = vmatpush1.msra.mxu0 %v90
    %124 = vmatprep.subr.mxu0 0.0
    %125 = vmatpush1.msra.mxu0 %v89
    %126 = vmatprep.subr.mxu0 0.0
    %127 = vmatpush1.msra.mxu0 %v88
    %128 = vmatprep.subr.mxu0 0.0
    %129 = vmatpush1.msra.mxu0 %v87
    %130 = vmatprep.subr.mxu0 0.0
    %131 = vmatpush1.msra.mxu0 %v86
    %132 = vmatprep.subr.mxu0 0.0
    %133 = vmatpush1.msra.mxu0 %v85
    %134 = vmatprep.subr.mxu0 0.0
    %135 = vmatpush1.msra.mxu0 %v84
    %136 = vmatprep.subr.mxu0 0.0
    %137 = vmatpush2.msra.mxu0 0.0
    %138 = vmatprep.subr.mxu0 0.0
    %139 = vmatpush2.msra.mxu0 0.0
    %140 = vmatprep.subr.mxu0 0.0
    %141 = vmatpush2.msra.mxu0 0.0
    %142 = vmatprep.subr.mxu0 0.0
    %143 = vmatpush2.msra.mxu0 0.0
    %144 = vmatprep.subr.mxu0 0.0
    %145 = vmatpush2.msra.mxu0 0.0
    %146 = vmatprep.subr.mxu0 0.0
    %147 = vmatpush2.msra.mxu0 0.0
    %148 = vmatprep.subr.mxu0 0.0
    %149 = vmatpush2.msra.mxu0 0.0
    %150 = vmatprep.subr.mxu0 0.0
    %151 = vmatpush2.msra.mxu0 0.0
    %152 = vmatprep.subr.mxu0 0.0
    %153 = vmatpush2.msra.mxu0 0.0
    %154 = vmatprep.subr.mxu0 0.0
    %155 = vmatpush2.msra.mxu0 0.0
    %156 = vmatprep.subr.mxu0 0.0
    %157 = vmatpush2.msra.mxu0 0.0
    %158 = vmatprep.subr.mxu0 0.0
    %159 = vmatpush2.msra.mxu0 0.0
    %160 = vmatprep.subr.mxu0 0.0
    %161 = vmatpush2.msra.mxu0 0.0
    %162 = vmatprep.subr.mxu0 0.0
    %163 = vmatpush2.msra.mxu0 0.0
    %164 = vmatprep.subr.mxu0 0.0
    %165 = vmatpush2.msra.mxu0 0.0
    %166 = vmatprep.subr.mxu0 0.0
    %167 = vmatpush2.msra.mxu0 0.0
    %168 = vmatprep.mubr.f32.mxu0 0.0
    %169 = vmatmul.mubr.f32.gmra.mxu0 %v83
    %v170 = vpop.f32.mrf.mxu0
    %v171 = vadd.f32 %v103, %v170
    %v172 = vpop.f32.mrf.mxu0
    %173 = vdwg.mxu0
    %vm174 = vcmp.gt.f32.partialorder %v171, 0.0
    %v175 = vmul.f32 %v171, 0.01
    %v176 = vsel %vm174, %v171, %v175
    %v177 = vld [vmem:[#allocation7 + $0x80] sm:$0xff]
    %v178 = vld [vmem:[#allocation7 + $0x88] sm:$0xff]
    %v179 = vld [vmem:[#allocation7 + $0x90] sm:$0xff]
    %v180 = vld [vmem:[#allocation7 + $0x98] sm:$0xff]
    %v181 = vld [vmem:[#allocation7 + $0xa0] sm:$0xff]
    %v182 = vld [vmem:[#allocation7 + $0xa8] sm:$0xff]
    %v183 = vld [vmem:[#allocation7 + $0xb0] sm:$0xff]
    %v184 = vld [vmem:[#allocation7 + $0xb8] sm:$0xff]
    %v185 = vld [vmem:[#allocation7 + $0xc0] sm:$0xff]
    %v186 = vld [vmem:[#allocation7 + $0xc8] sm:$0xff]
    %v187 = vld [vmem:[#allocation7 + $0xd0] sm:$0xff]
    %v188 = vld [vmem:[#allocation7 + $0xd8] sm:$0xff]
    %v189 = vld [vmem:[#allocation7 + $0xe0] sm:$0xff]
    %v190 = vld [vmem:[#allocation7 + $0xe8] sm:$0xff]
    %v191 = vld [vmem:[#allocation7 + $0xf0] sm:$0xff]
    %v192 = vld [vmem:[#allocation7 + $0xf8] sm:$0xff]
    %v193 = vld [vmem:[#allocation7 + $0x100] sm:$0xff]
    %v194 = vld [vmem:[#allocation5] sm:$0xff]
    %vm195 = vcmask 64512
    %v197 = vsel %vm195, %v194, 0
    %199 = vmatprep.subr.mxu0 0.0
    %200 = vmatpush1.msra.mxu0 0.0
    %201 = vmatprep.subr.mxu0 0.0
    %202 = vmatpush1.msra.mxu0 0.0
    %203 = vmatprep.subr.mxu0 0.0
    %204 = vmatpush1.msra.mxu0 0.0
    %205 = vmatprep.subr.mxu0 0.0
    %206 = vmatpush1.msra.mxu0 0.0
    %207 = vmatprep.subr.mxu0 0.0
    %208 = vmatpush1.msra.mxu0 0.0
    %209 = vmatprep.subr.mxu0 0.0
    %210 = vmatpush1.msra.mxu0 0.0
    %211 = vmatprep.subr.mxu0 0.0
    %212 = vmatpush1.msra.mxu0 0.0
    %213 = vmatprep.subr.mxu0 0.0
    %214 = vmatpush1.msra.mxu0 0.0
    %215 = vmatprep.subr.mxu0 0.0
    %216 = vmatpush1.msra.mxu0 0.0
    %217 = vmatprep.subr.mxu0 0.0
    %218 = vmatpush1.msra.mxu0 0.0
    %219 = vmatprep.subr.mxu0 0.0
    %220 = vmatpush1.msra.mxu0 0.0
    %221 = vmatprep.subr.mxu0 0.0
    %222 = vmatpush1.msra.mxu0 0.0
    %223 = vmatprep.subr.mxu0 0.0
    %224 = vmatpush1.msra.mxu0 0.0
    %225 = vmatprep.subr.mxu0 0.0
    %226 = vmatpush1.msra.mxu0 0.0
    %227 = vmatprep.subr.mxu0 0.0
    %228 = vmatpush1.msra.mxu0 0.0
    %229 = vmatprep.subr.mxu0 0.0
    %230 = vmatpush1.msra.mxu0 %v193
    %231 = vmatprep.subr.mxu0 0.0
    %232 = vmatpush2.msra.mxu0 0.0
    %233 = vmatprep.subr.mxu0 0.0
    %234 = vmatpush2.msra.mxu0 0.0
    %235 = vmatprep.subr.mxu0 0.0
    %236 = vmatpush2.msra.mxu0 0.0
    %237 = vmatprep.subr.mxu0 0.0
    %238 = vmatpush2.msra.mxu0 0.0
    %239 = vmatprep.subr.mxu0 0.0
    %240 = vmatpush2.msra.mxu0 0.0
    %241 = vmatprep.subr.mxu0 0.0
    %242 = vmatpush2.msra.mxu0 0.0
    %243 = vmatprep.subr.mxu0 0.0
    %244 = vmatpush2.msra.mxu0 0.0
    %245 = vmatprep.subr.mxu0 0.0
    %246 = vmatpush2.msra.mxu0 0.0
    %247 = vmatprep.subr.mxu0 0.0
    %248 = vmatpush2.msra.mxu0 0.0
    %249 = vmatprep.subr.mxu0 0.0
    %250 = vmatpush2.msra.mxu0 0.0
    %251 = vmatprep.subr.mxu0 0.0
    %252 = vmatpush2.msra.mxu0 0.0
    %253 = vmatprep.subr.mxu0 0.0
    %254 = vmatpush2.msra.mxu0 0.0
    %255 = vmatprep.subr.mxu0 0.0
    %256 = vmatpush2.msra.mxu0 0.0
    %257 = vmatprep.subr.mxu0 0.0
    %258 = vmatpush2.msra.mxu0 0.0
    %259 = vmatprep.subr.mxu0 0.0
    %260 = vmatpush2.msra.mxu0 0.0
    %261 = vmatprep.subr.mxu0 0.0
    %262 = vmatpush2.msra.mxu0 0.0
    %263 = vmatprep.mubr.f32.mxu0 0.0
    %264 = vmatmul.mubr.f32.gmra.mxu0 %v197
    %v265 = vpop.f32.mrf.mxu0
    %v266 = vadd.f32 0.0, %v265
    %v267 = vpop.f32.mrf.mxu0
    %268 = vdwg.mxu0
    %269 = vmatprep.subr.mxu0 0.0
    %270 = vmatpush1.msra.mxu0 %v192
    %271 = vmatprep.subr.mxu0 0.0
    %272 = vmatpush1.msra.mxu0 %v191
    %273 = vmatprep.subr.mxu0 0.0
    %274 = vmatpush1.msra.mxu0 %v190
    %275 = vmatprep.subr.mxu0 0.0
    %276 = vmatpush1.msra.mxu0 %v189
    %277 = vmatprep.subr.mxu0 0.0
    %278 = vmatpush1.msra.mxu0 %v188
    %279 = vmatprep.subr.mxu0 0.0
    %280 = vmatpush1.msra.mxu0 %v187
    %281 = vmatprep.subr.mxu0 0.0
    %282 = vmatpush1.msra.mxu0 %v186
    %283 = vmatprep.subr.mxu0 0.0
    %284 = vmatpush1.msra.mxu0 %v185
    %285 = vmatprep.subr.mxu0 0.0
    %286 = vmatpush1.msra.mxu0 %v184
    %287 = vmatprep.subr.mxu0 0.0
    %288 = vmatpush1.msra.mxu0 %v183
    %289 = vmatprep.subr.mxu0 0.0
    %290 = vmatpush1.msra.mxu0 %v182
    %291 = vmatprep.subr.mxu0 0.0
    %292 = vmatpush1.msra.mxu0 %v181
    %293 = vmatprep.subr.mxu0 0.0
    %294 = vmatpush1.msra.mxu0 %v180
    %295 = vmatprep.subr.mxu0 0.0
    %296 = vmatpush1.msra.mxu0 %v179
    %297 = vmatprep.subr.mxu0 0.0
    %298 = vmatpush1.msra.mxu0 %v178
    %299 = vmatprep.subr.mxu0 0.0
    %300 = vmatpush1.msra.mxu0 %v177
    %301 = vmatprep.subr.mxu0 0.0
    %302 = vmatpush2.msra.mxu0 0.0
    %303 = vmatprep.subr.mxu0 0.0
    %304 = vmatpush2.msra.mxu0 0.0
    %305 = vmatprep.subr.mxu0 0.0
    %306 = vmatpush2.msra.mxu0 0.0
    %307 = vmatprep.subr.mxu0 0.0
    %308 = vmatpush2.msra.mxu0 0.0
    %309 = vmatprep.subr.mxu0 0.0
    %310 = vmatpush2.msra.mxu0 0.0
    %311 = vmatprep.subr.mxu0 0.0
    %312 = vmatpush2.msra.mxu0 0.0
    %313 = vmatprep.subr.mxu0 0.0
    %314 = vmatpush2.msra.mxu0 0.0
    %315 = vmatprep.subr.mxu0 0.0
    %316 = vmatpush2.msra.mxu0 0.0
    %317 = vmatprep.subr.mxu0 0.0
    %318 = vmatpush2.msra.mxu0 0.0
    %319 = vmatprep.subr.mxu0 0.0
    %320 = vmatpush2.msra.mxu0 0.0
    %321 = vmatprep.subr.mxu0 0.0
    %322 = vmatpush2.msra.mxu0 0.0
    %323 = vmatprep.subr.mxu0 0.0
    %324 = vmatpush2.msra.mxu0 0.0
    %325 = vmatprep.subr.mxu0 0.0
    %326 = vmatpush2.msra.mxu0 0.0
    %327 = vmatprep.subr.mxu0 0.0
    %328 = vmatpush2.msra.mxu0 0.0
    %329 = vmatprep.subr.mxu0 0.0
    %330 = vmatpush2.msra.mxu0 0.0
    %331 = vmatprep.subr.mxu0 0.0
    %332 = vmatpush2.msra.mxu0 0.0
    %333 = vmatprep.mubr.f32.mxu0 0.0
    %334 = vmatmul.mubr.f32.gmra.mxu0 %v176
    %v335 = vpop.f32.mrf.mxu0
    %v336 = vadd.f32 %v266, %v335
    %v337 = vpop.f32.mrf.mxu0
    %338 = vdwg.mxu0
    %v339 = vlaneseq
    %v340 = vshrl.u32 %v339, 7
    %v341 = vsub.s32 3, %v340
    %v342 = vrot.slane %v53, %v341
    %v343 = vadd.f32 %v336, %v342
    %vm344 = vcmp.gt.f32.partialorder %v343, 0.0
    %v345 = vmul.f32 %v343, 0.01
    %v346 = vsel %vm344, %v343, %v345
    %v347 = vlaneseq
    %v348 = vshrl.u32 %v347, 7
    %v349 = vsub.s32 4, %v348
    %v350 = vrot.slane %v53, %v349
    %v351 = vmul.f32 %v346, %v350
    %352 = vadd.xlane.f32.xlu0 %v351
    %v353 = vpop.xlane.xlu0 %352
    %v354 = vlaneseq
    %v355 = vshrl.u32 %v354, 7
    %v356 = vsub.s32 5, %v355
    %v357 = vrot.slane %v53, %v356
    %v358 = vadd.f32 %v353, %v357
    %359 = vst [vmem:[#allocation8] sm:$0xff] %v358
    // Predicated region
    $region26: #{tpu_custom_call.1} parent=1 // pred_check
      _
    $region27: #{tpu_custom_call.1} parent=1 // pred_check_branch
      %361 = sbr.rel (0) target = $region29
    $region28: #{tpu_custom_call.1} parent=1 // pred_region
      %s363 = ssub.s32 128, 128
      %364 = vsyncadd [#allocation4], %s363
      %s366 = sshll.u32 [#allocation8], 4
      %s367 = int_to_ptr.vmem [resolvable:$true] %s366
      %369 = dma.vmem_to_hbm [thread:$0]  %s367, 128, %s3, [#allocation4]
    $region29: #{tpu_custom_call.1} parent=1 // pred_fallthru
      _
    // Predicated region
    $region30: #{tpu_custom_call.1} parent=1 // pred_check
      _
    $region31: #{tpu_custom_call.1} parent=1 // pred_check_branch
      %371 = sbr.rel (0) target = $region33
    $region32: #{tpu_custom_call.1} parent=1 // pred_region
      %372 = dma.done [#allocation4], 128
    $region33: #{tpu_custom_call.1} parent=1 // pred_fallthru
      _
    %373 = vsyncpa [#allocation3], 1
    %374 = vsyncpa [#allocation6], 1
    %375 = vsyncpa [#allocation4], 1

</llo_original>
